<compile_context>
chip_gen: v7x
topology: tpu7x:2x2x1
jax: 0.10.0
libtpu: 0.0.40
codegen_flags: <defaults>
</compile_context>

<pallas_src>
import functools

import jax
import jax.numpy as jnp
from jax.experimental import pallas as pl
from jax.experimental.pallas import tpu as pltpu


def _round_up(n, m):
    return ((n + m - 1) // m) * m


def _qnet_kernel(x_ref, w1_ref, b1_ref, w2_ref, b2_ref,
                 w3_ref, b3_ref, w4_ref, b4_ref, out_ref):
    # fc1 + ReLU
    h = jnp.dot(x_ref[...], w1_ref[...], preferred_element_type=jnp.float32)
    h = jnp.maximum(h + b1_ref[...], 0.0)
    # fc2 + ReLU
    h = jnp.dot(h, w2_ref[...], preferred_element_type=jnp.float32)
    h = jnp.maximum(h + b2_ref[...], 0.0)
    # fc3 + ReLU
    h = jnp.dot(h, w3_ref[...], preferred_element_type=jnp.float32)
    h = jnp.maximum(h + b3_ref[...], 0.0)
    # fc4 (no activation); output last dim is padded to a multiple of 128 so
    # this store is lane-dense (unmasked vst).
    h = jnp.dot(h, w4_ref[...], preferred_element_type=jnp.float32)
    out_ref[...] = (h + b4_ref[...]).astype(out_ref.dtype)


def _resident_spec(shape):
    # Full-array block, same block index at every grid step -> stays in VMEM.
    return pl.BlockSpec(shape, lambda i: (0,) * len(shape))


@jax.jit
def qnetwork_forward(x, params):
    """x: [B, state_size] float32 -> [B, action_size] float32."""
    w1, b1, w2, b2, w3, b3, w4, b4 = params
    B, state_size = x.shape
    action_size = w4.shape[1]

    # Lane-dense output: pad fc4's output dim up to a multiple of 128.
    a_pad = _round_up(max(action_size, 128), 128)
    if a_pad != action_size:
        w4 = jnp.pad(w4, ((0, 0), (0, a_pad - action_size)))
        b4 = jnp.pad(b4, ((0, 0), (0, a_pad - action_size)))

    # Batch tile: multiple of 8 (sublane rule), capped at 256 (one full MXU
    # pass worth of M on v6e/v7x).  Sized well under v5e's 16 MiB default
    # scoped VMEM: per step ~TB*2.5 KiB intermediates + ~336 KiB weights.
    b8 = _round_up(B, 8)
    tb = min(256, b8)
    b_pad = _round_up(B, tb)
    if b_pad != B:
        x = jnp.pad(x, ((0, b_pad - B), (0, 0)))

    grid = (b_pad // tb,)

    in_arrays = (x, w1, b1, w2, b2, w3, b3, w4, b4)
    in_specs = [
        pl.BlockSpec((tb, state_size), lambda i: (i, 0)),   # x: tiled on batch
        _resident_spec(w1.shape), _resident_spec(b1.shape),
        _resident_spec(w2.shape), _resident_spec(b2.shape),
        _resident_spec(w3.shape), _resident_spec(b3.shape),
        _resident_spec(w4.shape), _resident_spec(b4.shape),
    ]
    out_spec = pl.BlockSpec((tb, a_pad), lambda i: (i, 0))

    out_padded = pl.pallas_call(
        _qnet_kernel,
        out_shape=jax.ShapeDtypeStruct((b_pad, a_pad), jnp.float32),
        grid=grid,
        in_specs=in_specs,
        out_specs=out_spec,
        compiler_params=pltpu.CompilerParams(
            dimension_semantics=("parallel",),      # dual-TC sharding on v7x
            vmem_limit_bytes=64 * 1024 * 1024,      # explicit, with headroom
        ),
    )(*in_arrays)

    return out_padded[:B, :action_size]


def _xavier_uniform(key, fan_in, fan_out, dtype=jnp.float32):
    # Matches torch.nn.init.xavier_uniform_ (gain=1.0):
    # U(-a, a), a = sqrt(6 / (fan_in + fan_out)).  Stored as [in, out]
    # (transposed vs. PyTorch's [out, in]); the bound is symmetric in
    # fan_in/fan_out so the distribution is identical.
    a = jnp.sqrt(6.0 / (fan_in + fan_out))
    return jax.random.uniform(key, (fan_in, fan_out), dtype=dtype,
                              minval=-a, maxval=a)


def init_qnetwork_params(key, state_size, action_size):
    k1, k2, k3, k4 = jax.random.split(key, 4)
    dims = [(state_size, 128), (128, 256), (256, 128), (128, action_size)]
    keys = [k1, k2, k3, k4]
    params = []
    for (fi, fo), k in zip(dims, keys):
        w = _xavier_uniform(k, fi, fo)
        b = jnp.zeros((1, fo), dtype=jnp.float32)  # nn.init.constant_(bias, 0)
        params += [w, b]
    return tuple(params)


def _reference_forward(x, params):
    w1, b1, w2, b2, w3, b3, w4, b4 = params
    h = jnp.maximum(x @ w1 + b1, 0.0)
    h = jnp.maximum(h @ w2 + b2, 0.0)
    h = jnp.maximum(h @ w3 + b3, 0.0)
    return h @ w4 + b4


if __name__ == "__main__":
    key = jax.random.PRNGKey(0)
    pkey, xkey = jax.random.split(key)

    batch = 8
    state_size = 16
    action_size = 4

    params = init_qnetwork_params(pkey, state_size, action_size)
    x = jax.random.normal(xkey, (batch, state_size), dtype=jnp.float32)

    out = qnetwork_forward(x, params)
    out = jax.block_until_ready(out)

    ref = _reference_forward(x, params)
    assert out.shape == (batch, action_size)
    assert jnp.allclose(out, ref, atol=1e-5, rtol=1e-5)

    print("KERNEL_OK")
</pallas_src>

<mosaic_0001>
module attributes {stable_mosaic.version = 11 : i64} {
  func.func @_qnet_kernel(%arg0: i32, %arg1: memref<8x16xf32, #tpu.memory_space<vmem>>, %arg2: memref<16x128xf32, #tpu.memory_space<vmem>>, %arg3: memref<1x128xf32, #tpu.memory_space<vmem>>, %arg4: memref<128x256xf32, #tpu.memory_space<vmem>>, %arg5: memref<1x256xf32, #tpu.memory_space<vmem>>, %arg6: memref<256x128xf32, #tpu.memory_space<vmem>>, %arg7: memref<1x128xf32, #tpu.memory_space<vmem>>, %arg8: memref<128x128xf32, #tpu.memory_space<vmem>>, %arg9: memref<1x128xf32, #tpu.memory_space<vmem>>, %arg10: memref<8x128xf32, #tpu.memory_space<vmem>>) attributes {dimension_semantics = [#tpu.dimension_semantics<parallel>], iteration_bounds = array<i64: 1>, scalar_prefetch = 0 : i64, scratch_operands = 0 : i64, tpu.core_type = #tpu.core_type<tc>, window_params = [{transform_indices = @transform_0, window_bounds = array<i64: 8, 16>}, {pipeline_mode = #tpu.pipeline_mode<synchronous>, transform_indices = @transform_1, window_bounds = array<i64: 16, 128>}, {pipeline_mode = #tpu.pipeline_mode<synchronous>, transform_indices = @transform_2, window_bounds = array<i64: 1, 128>}, {pipeline_mode = #tpu.pipeline_mode<synchronous>, transform_indices = @transform_3, window_bounds = array<i64: 128, 256>}, {pipeline_mode = #tpu.pipeline_mode<synchronous>, transform_indices = @transform_4, window_bounds = array<i64: 1, 256>}, {pipeline_mode = #tpu.pipeline_mode<synchronous>, transform_indices = @transform_5, window_bounds = array<i64: 256, 128>}, {pipeline_mode = #tpu.pipeline_mode<synchronous>, transform_indices = @transform_6, window_bounds = array<i64: 1, 128>}, {pipeline_mode = #tpu.pipeline_mode<synchronous>, transform_indices = @transform_7, window_bounds = array<i64: 128, 128>}, {pipeline_mode = #tpu.pipeline_mode<synchronous>, transform_indices = @transform_8, window_bounds = array<i64: 1, 128>}, {transform_indices = @transform_9, window_bounds = array<i64: 8, 128>}]} {
    %c0 = arith.constant 0 : index
    %c0_0 = arith.constant 0 : index
    %0 = vector.load %arg1[%c0, %c0_0] : memref<8x16xf32, #tpu.memory_space<vmem>>, vector<8x16xf32>
    %c0_1 = arith.constant 0 : index
    %c0_2 = arith.constant 0 : index
    %1 = vector.load %arg2[%c0_1, %c0_2] : memref<16x128xf32, #tpu.memory_space<vmem>>, vector<16x128xf32>
    %cst = arith.constant dense<0.000000e+00> : vector<8x128xf32>
    %2 = tpu.matmul %0, %1, %cst {dimension_numbers = #tpu.dot_dimension_numbers<[1], [0], [0], [1], [0, 0, 1, 1], [], []>} : vector<8x16xf32>, vector<16x128xf32>, vector<8x128xf32> -> vector<8x128xf32>
    %c0_3 = arith.constant 0 : index
    %c0_4 = arith.constant 0 : index
    %3 = vector.load %arg3[%c0_3, %c0_4] : memref<1x128xf32, #tpu.memory_space<vmem>>, vector<1x128xf32>
    %4 = vector.broadcast %3 : vector<1x128xf32> to vector<8x128xf32>
    %5 = arith.addf %2, %4 : vector<8x128xf32>
    %cst_5 = arith.constant 0.000000e+00 : f32
    %6 = vector.broadcast %cst_5 : f32 to vector<8x128xf32>
    %7 = arith.maximumf %5, %6 : vector<8x128xf32>
    %c0_6 = arith.constant 0 : index
    %c0_7 = arith.constant 0 : index
    %8 = vector.load %arg4[%c0_6, %c0_7] : memref<128x256xf32, #tpu.memory_space<vmem>>, vector<128x256xf32>
    %cst_8 = arith.constant dense<0.000000e+00> : vector<8x256xf32>
    %9 = tpu.matmul %7, %8, %cst_8 {dimension_numbers = #tpu.dot_dimension_numbers<[1], [0], [0], [1], [0, 0, 1, 1], [], []>} : vector<8x128xf32>, vector<128x256xf32>, vector<8x256xf32> -> vector<8x256xf32>
    %c0_9 = arith.constant 0 : index
    %c0_10 = arith.constant 0 : index
    %10 = vector.load %arg5[%c0_9, %c0_10] : memref<1x256xf32, #tpu.memory_space<vmem>>, vector<1x256xf32>
    %11 = vector.broadcast %10 : vector<1x256xf32> to vector<8x256xf32>
    %12 = arith.addf %9, %11 : vector<8x256xf32>
    %cst_11 = arith.constant 0.000000e+00 : f32
    %13 = vector.broadcast %cst_11 : f32 to vector<8x256xf32>
    %14 = arith.maximumf %12, %13 : vector<8x256xf32>
    %c0_12 = arith.constant 0 : index
    %c0_13 = arith.constant 0 : index
    %15 = vector.load %arg6[%c0_12, %c0_13] : memref<256x128xf32, #tpu.memory_space<vmem>>, vector<256x128xf32>
    %cst_14 = arith.constant dense<0.000000e+00> : vector<8x128xf32>
    %16 = tpu.matmul %14, %15, %cst_14 {dimension_numbers = #tpu.dot_dimension_numbers<[1], [0], [0], [1], [0, 0, 1, 1], [], []>} : vector<8x256xf32>, vector<256x128xf32>, vector<8x128xf32> -> vector<8x128xf32>
    %c0_15 = arith.constant 0 : index
    %c0_16 = arith.constant 0 : index
    %17 = vector.load %arg7[%c0_15, %c0_16] : memref<1x128xf32, #tpu.memory_space<vmem>>, vector<1x128xf32>
    %18 = vector.broadcast %17 : vector<1x128xf32> to vector<8x128xf32>
    %19 = arith.addf %16, %18 : vector<8x128xf32>
    %cst_17 = arith.constant 0.000000e+00 : f32
    %20 = vector.broadcast %cst_17 : f32 to vector<8x128xf32>
    %21 = arith.maximumf %19, %20 : vector<8x128xf32>
    %c0_18 = arith.constant 0 : index
    %c0_19 = arith.constant 0 : index
    %22 = vector.load %arg8[%c0_18, %c0_19] : memref<128x128xf32, #tpu.memory_space<vmem>>, vector<128x128xf32>
    %cst_20 = arith.constant dense<0.000000e+00> : vector<8x128xf32>
    %23 = tpu.matmul %21, %22, %cst_20 {dimension_numbers = #tpu.dot_dimension_numbers<[1], [0], [0], [1], [0, 0, 1, 1], [], []>} : vector<8x128xf32>, vector<128x128xf32>, vector<8x128xf32> -> vector<8x128xf32>
    %c0_21 = arith.constant 0 : index
    %c0_22 = arith.constant 0 : index
    %24 = vector.load %arg9[%c0_21, %c0_22] : memref<1x128xf32, #tpu.memory_space<vmem>>, vector<1x128xf32>
    %25 = vector.broadcast %24 : vector<1x128xf32> to vector<8x128xf32>
    %26 = arith.addf %23, %25 : vector<8x128xf32>
    %c0_23 = arith.constant 0 : index
    %c0_24 = arith.constant 0 : index
    %27 = vector.load %arg10[%c0_23, %c0_24] : memref<8x128xf32, #tpu.memory_space<vmem>>, vector<8x128xf32>
    tpu.vector_store %arg10[%c0_23, %c0_24], %26 {strides = array<i32>} : memref<8x128xf32, #tpu.memory_space<vmem>>, vector<8x128xf32>,
    return
  }
  func.func @transform_0(%arg0: i32) -> (i32, i32) {
    %c0_i32 = arith.constant 0 : i32
    %c0_i32_0 = arith.constant 0 : i32
    return %arg0, %c0_i32 : i32, i32
  }
  func.func @transform_1(%arg0: i32) -> (i32, i32) {
    %c0_i32 = arith.constant 0 : i32
    %c0_i32_0 = arith.constant 0 : i32
    %c0_i32_1 = arith.constant 0 : i32
    return %c0_i32, %c0_i32_0 : i32, i32
  }
  func.func @transform_2(%arg0: i32) -> (i32, i32) {
    %c0_i32 = arith.constant 0 : i32
    %c0_i32_0 = arith.constant 0 : i32
    %c0_i32_1 = arith.constant 0 : i32
    return %c0_i32, %c0_i32_0 : i32, i32
  }
  func.func @transform_3(%arg0: i32) -> (i32, i32) {
    %c0_i32 = arith.constant 0 : i32
    %c0_i32_0 = arith.constant 0 : i32
    %c0_i32_1 = arith.constant 0 : i32
    return %c0_i32, %c0_i32_0 : i32, i32
  }
  func.func @transform_4(%arg0: i32) -> (i32, i32) {
    %c0_i32 = arith.constant 0 : i32
    %c0_i32_0 = arith.constant 0 : i32
    %c0_i32_1 = arith.constant 0 : i32
    return %c0_i32, %c0_i32_0 : i32, i32
  }
  func.func @transform_5(%arg0: i32) -> (i32, i32) {
    %c0_i32 = arith.constant 0 : i32
    %c0_i32_0 = arith.constant 0 : i32
    %c0_i32_1 = arith.constant 0 : i32
    return %c0_i32, %c0_i32_0 : i32, i32
  }
  func.func @transform_6(%arg0: i32) -> (i32, i32) {
    %c0_i32 = arith.constant 0 : i32
    %c0_i32_0 = arith.constant 0 : i32
    %c0_i32_1 = arith.constant 0 : i32
    return %c0_i32, %c0_i32_0 : i32, i32
  }
  func.func @transform_7(%arg0: i32) -> (i32, i32) {
    %c0_i32 = arith.constant 0 : i32
    %c0_i32_0 = arith.constant 0 : i32
    %c0_i32_1 = arith.constant 0 : i32
    return %c0_i32, %c0_i32_0 : i32, i32
  }
  func.func @transform_8(%arg0: i32) -> (i32, i32) {
    %c0_i32 = arith.constant 0 : i32
    %c0_i32_0 = arith.constant 0 : i32
    %c0_i32_1 = arith.constant 0 : i32
    return %c0_i32, %c0_i32_0 : i32, i32
  }
  func.func @transform_9(%arg0: i32) -> (i32, i32) {
    %c0_i32 = arith.constant 0 : i32
    %c0_i32_0 = arith.constant 0 : i32
    return %arg0, %c0_i32 : i32, i32
  }
}

</mosaic_0001>

<llo_original>
// kernel: qnetwork_forward.1
$region0: #{qnetwork_forward.1}
  #allocation0 [shape = 'u32[]', space=smem, size = 0x4, offset = 0x4, fixed_abs, tag = 'smem constant byte address 0x4 - core index']
  #allocation1 [shape = 'u32[144,128]{1,0:T(1,128)}', space=vmem, size = 0x12000, scoped, tag = 'internal scratch']
  %s0 = inlined_call_operand.hbm [shape: f32[8,16], index: 0, kind: input, shape index: {}]
  %s1 = inlined_call_operand.hbm [shape: f32[16,128], index: 1, kind: input, shape index: {}]
  %s2 = inlined_call_operand.hbm [shape: f32[1,128], index: 2, kind: input, shape index: {}]
  %s3 = inlined_call_operand.hbm [shape: f32[128,256], index: 3, kind: input, shape index: {}]
  %s4 = inlined_call_operand.hbm [shape: f32[1,256], index: 4, kind: input, shape index: {}]
  %s5 = inlined_call_operand.hbm [shape: f32[256,128], index: 5, kind: input, shape index: {}]
  %s6 = inlined_call_operand.hbm [shape: f32[1,128], index: 6, kind: input, shape index: {}]
  %s7 = inlined_call_operand.hbm [shape: f32[128,128], index: 7, kind: input, shape index: {}]
  %s8 = inlined_call_operand.hbm [shape: f32[1,128], index: 8, kind: input, shape index: {}]
  %s9 = inlined_call_operand.hbm [shape: f32[8,128], index: 9, kind: output, shape index: {}]
  %s10 = sld [smem:[#allocation0]]
  $region82: #{qnetwork_forward.1} parent=0
    _
  %s12 = ssub.s32 1, %s10
  %s13 = scalar_select 0, %s12, %s10
  $region1: #{qnetwork_forward.1} parent=0
    #allocation2 [shape = 'u8[4096]{0}', space=vmem, size = 0x1000, scoped, tag = 'input window, operand 0, single buffered']
    #allocation3 [shape = 's32[1]{0}', space=sflag, size = 0x4, scoped, tag = 'scoped memory for qnetwork_forward.1']
    #allocation4 [shape = 's32[1]{0}', space=sflag, size = 0x4, scoped, tag = 'scoped memory for qnetwork_forward.1']
    #allocation5 [shape = 'u8[8192]{0}', space=vmem, size = 0x2000, scoped, tag = 'input window, operand 1, single buffered']
    #allocation6 [shape = 's32[1]{0}', space=sflag, size = 0x4, scoped, tag = 'scoped memory for qnetwork_forward.1']
    #allocation7 [shape = 'u8[512]{0}', space=vmem, size = 0x400, scoped, tag = 'input window, operand 2, single buffered']
    #allocation8 [shape = 'u8[131072]{0}', space=vmem, size = 0x20000, scoped, tag = 'input window, operand 3, single buffered']
    #allocation9 [shape = 's32[1]{0}', space=sflag, size = 0x4, scoped, tag = 'scoped memory for qnetwork_forward.1']
    #allocation10 [shape = 'u8[1024]{0}', space=vmem, size = 0x400, scoped, tag = 'input window, operand 4, single buffered']
    #allocation11 [shape = 'u8[131072]{0}', space=vmem, size = 0x20000, scoped, tag = 'input window, operand 5, single buffered']
    #allocation12 [shape = 's32[1]{0}', space=sflag, size = 0x4, scoped, tag = 'scoped memory for qnetwork_forward.1']
    #allocation13 [shape = 'u8[512]{0}', space=vmem, size = 0x400, scoped, tag = 'input window, operand 6, single buffered']
    #allocation14 [shape = 'u8[65536]{0}', space=vmem, size = 0x10000, scoped, tag = 'input window, operand 7, single buffered']
    #allocation15 [shape = 's32[1]{0}', space=sflag, size = 0x4, scoped, tag = 'scoped memory for qnetwork_forward.1']
    #allocation16 [shape = 'u8[512]{0}', space=vmem, size = 0x400, scoped, tag = 'input window, operand 8, single buffered']
    #allocation17 [shape = 'u8[4096]{0}', space=vmem, size = 0x1000, scoped, tag = 'output window, operand 0, single buffered']
    %14 = vsyncpa [#allocation3], 0
    %15 = vsyncpa [#allocation6], 0
    %16 = vsyncpa [#allocation9], 0
    %17 = vsyncpa [#allocation12], 0
    %18 = vsyncpa [#allocation15], 0
    %19 = vsyncpa [#allocation4], 0
    // Predicated region
    $region2: #{qnetwork_forward.1} parent=1 // pred_check
      _
    $region3: #{qnetwork_forward.1} parent=1 // pred_check_branch
      %21 = sbr.rel (0) target = $region5
    $region4: #{qnetwork_forward.1} parent=1 // pred_region
      %s23 = ssub.s32 128, 128
      %24 = vsyncadd [#allocation3], %s23
      %s26 = sshll.u32 [#allocation2], 4
      %s27 = int_to_ptr.vmem [resolvable:$true] %s26
      %29 = dma.hbm_to_vmem [thread:$0]  %s0, 128, %s27, [#allocation3]
    $region5: #{qnetwork_forward.1} parent=1 // pred_fallthru
      _
    // Predicated region
    $region6: #{qnetwork_forward.1} parent=1 // pred_check
      _
    $region7: #{qnetwork_forward.1} parent=1 // pred_check_branch
      %31 = sbr.rel (0) target = $region9
    $region8: #{qnetwork_forward.1} parent=1 // pred_region
      %s33 = ssub.s32 256, 256
      %34 = vsyncadd [#allocation6], %s33
      %s35 = sshll.u32 [#allocation5], 4
      %s36 = int_to_ptr.vmem [resolvable:$true] %s35
      %41 = dma.hbm_to_vmem [thread:$0]  %s1, 256, %s36, [#allocation6], 128, 128, 8
    $region9: #{qnetwork_forward.1} parent=1 // pred_fallthru
      _
    // Predicated region
    $region10: #{qnetwork_forward.1} parent=1 // pred_check
      _
    $region11: #{qnetwork_forward.1} parent=1 // pred_check_branch
      %43 = sbr.rel (0) target = $region13
    $region12: #{qnetwork_forward.1} parent=1 // pred_region
      %s45 = ssub.s32 16, 16
      %46 = vsyncadd [#allocation6], %s45
      %s48 = sshll.u32 [#allocation7], 4
      %s49 = int_to_ptr.vmem [resolvable:$true] %s48
      %51 = dma.hbm_to_vmem [thread:$0]  %s2, 16, %s49, [#allocation6]
    $region13: #{qnetwork_forward.1} parent=1 // pred_fallthru
      _
    // Predicated region
    $region14: #{qnetwork_forward.1} parent=1 // pred_check
      _
    $region15: #{qnetwork_forward.1} parent=1 // pred_check_branch
      %53 = sbr.rel (0) target = $region17
    $region16: #{qnetwork_forward.1} parent=1 // pred_region
      %s55 = ssub.s32 4096, 4096
      %56 = vsyncadd [#allocation9], %s55
      %s57 = sshll.u32 [#allocation8], 4
      %s58 = int_to_ptr.vmem [resolvable:$true] %s57
      %63 = dma.hbm_to_vmem [thread:$0]  %s3, 4096, %s58, [#allocation9], 256, 256, 16
    $region17: #{qnetwork_forward.1} parent=1 // pred_fallthru
      _
    // Predicated region
    $region18: #{qnetwork_forward.1} parent=1 // pred_check
      _
    $region19: #{qnetwork_forward.1} parent=1 // pred_check_branch
      %65 = sbr.rel (0) target = $region21
    $region20: #{qnetwork_forward.1} parent=1 // pred_region
      %s67 = ssub.s32 32, 32
      %68 = vsyncadd [#allocation9], %s67
      %s70 = sshll.u32 [#allocation10], 4
      %s71 = int_to_ptr.vmem [resolvable:$true] %s70
      %73 = dma.hbm_to_vmem [thread:$0]  %s4, 32, %s71, [#allocation9]
    $region21: #{qnetwork_forward.1} parent=1 // pred_fallthru
      _
    // Predicated region
    $region22: #{qnetwork_forward.1} parent=1 // pred_check
      _
    $region23: #{qnetwork_forward.1} parent=1 // pred_check_branch
      %75 = sbr.rel (0) target = $region25
    $region24: #{qnetwork_forward.1} parent=1 // pred_region
      %s77 = ssub.s32 4096, 4096
      %78 = vsyncadd [#allocation12], %s77
      %s79 = sshll.u32 [#allocation11], 4
      %s80 = int_to_ptr.vmem [resolvable:$true] %s79
      %85 = dma.hbm_to_vmem [thread:$0]  %s5, 4096, %s80, [#allocation12], 128, 128, 8
    $region25: #{qnetwork_forward.1} parent=1 // pred_fallthru
      _
    // Predicated region
    $region26: #{qnetwork_forward.1} parent=1 // pred_check
      _
    $region27: #{qnetwork_forward.1} parent=1 // pred_check_branch
      %87 = sbr.rel (0) target = $region29
    $region28: #{qnetwork_forward.1} parent=1 // pred_region
      %s89 = ssub.s32 16, 16
      %90 = vsyncadd [#allocation12], %s89
      %s92 = sshll.u32 [#allocation13], 4
      %s93 = int_to_ptr.vmem [resolvable:$true] %s92
      %95 = dma.hbm_to_vmem [thread:$0]  %s6, 16, %s93, [#allocation12]
    $region29: #{qnetwork_forward.1} parent=1 // pred_fallthru
      _
    // Predicated region
    $region30: #{qnetwork_forward.1} parent=1 // pred_check
      _
    $region31: #{qnetwork_forward.1} parent=1 // pred_check_branch
      %97 = sbr.rel (0) target = $region33
    $region32: #{qnetwork_forward.1} parent=1 // pred_region
      %s99 = ssub.s32 2048, 2048
      %100 = vsyncadd [#allocation15], %s99
      %s101 = sshll.u32 [#allocation14], 4
      %s102 = int_to_ptr.vmem [resolvable:$true] %s101
      %107 = dma.hbm_to_vmem [thread:$0]  %s7, 2048, %s102, [#allocation15], 128, 128, 8
    $region33: #{qnetwork_forward.1} parent=1 // pred_fallthru
      _
    // Predicated region
    $region34: #{qnetwork_forward.1} parent=1 // pred_check
      _
    $region35: #{qnetwork_forward.1} parent=1 // pred_check_branch
      %109 = sbr.rel (0) target = $region37
    $region36: #{qnetwork_forward.1} parent=1 // pred_region
      %s111 = ssub.s32 16, 16
      %112 = vsyncadd [#allocation15], %s111
      %s114 = sshll.u32 [#allocation16], 4
      %s115 = int_to_ptr.vmem [resolvable:$true] %s114
      %117 = dma.hbm_to_vmem [thread:$0]  %s8, 16, %s115, [#allocation15]
    $region37: #{qnetwork_forward.1} parent=1 // pred_fallthru
      _
    // Predicated region
    $region38: #{qnetwork_forward.1} parent=1 // pred_check
      _
    $region39: #{qnetwork_forward.1} parent=1 // pred_check_branch
      %119 = sbr.rel (0) target = $region41
    $region40: #{qnetwork_forward.1} parent=1 // pred_region
      %120 = dma.done [#allocation3], 128
    $region41: #{qnetwork_forward.1} parent=1 // pred_fallthru
      _
    // Predicated region
    $region42: #{qnetwork_forward.1} parent=1 // pred_check
      _
    $region43: #{qnetwork_forward.1} parent=1 // pred_check_branch
      %122 = sbr.rel (0) target = $region45
    $region44: #{qnetwork_forward.1} parent=1 // pred_region
      %123 = dma.done [#allocation6], 256
    $region45: #{qnetwork_forward.1} parent=1 // pred_fallthru
      _
    // Predicated region
    $region46: #{qnetwork_forward.1} parent=1 // pred_check
      _
    $region47: #{qnetwork_forward.1} parent=1 // pred_check_branch
      %125 = sbr.rel (0) target = $region49
    $region48: #{qnetwork_forward.1} parent=1 // pred_region
      %126 = dma.done [#allocation6], 16
    $region49: #{qnetwork_forward.1} parent=1 // pred_fallthru
      _
    // Predicated region
    $region50: #{qnetwork_forward.1} parent=1 // pred_check
      _
    $region51: #{qnetwork_forward.1} parent=1 // pred_check_branch
      %128 = sbr.rel (0) target = $region53
    $region52: #{qnetwork_forward.1} parent=1 // pred_region
      %129 = dma.done [#allocation9], 4096
    $region53: #{qnetwork_forward.1} parent=1 // pred_fallthru
      _
    // Predicated region
    $region54: #{qnetwork_forward.1} parent=1 // pred_check
      _
    $region55: #{qnetwork_forward.1} parent=1 // pred_check_branch
      %131 = sbr.rel (0) target = $region57
    $region56: #{qnetwork_forward.1} parent=1 // pred_region
      %132 = dma.done [#allocation9], 32
    $region57: #{qnetwork_forward.1} parent=1 // pred_fallthru
      _
    // Predicated region
    $region58: #{qnetwork_forward.1} parent=1 // pred_check
      _
    $region59: #{qnetwork_forward.1} parent=1 // pred_check_branch
      %134 = sbr.rel (0) target = $region61
    $region60: #{qnetwork_forward.1} parent=1 // pred_region
      %135 = dma.done [#allocation12], 4096
    $region61: #{qnetwork_forward.1} parent=1 // pred_fallthru
      _
    // Predicated region
    $region62: #{qnetwork_forward.1} parent=1 // pred_check
      _
    $region63: #{qnetwork_forward.1} parent=1 // pred_check_branch
      %137 = sbr.rel (0) target = $region65
    $region64: #{qnetwork_forward.1} parent=1 // pred_region
      %138 = dma.done [#allocation12], 16
    $region65: #{qnetwork_forward.1} parent=1 // pred_fallthru
      _
    // Predicated region
    $region66: #{qnetwork_forward.1} parent=1 // pred_check
      _
    $region67: #{qnetwork_forward.1} parent=1 // pred_check_branch
      %140 = sbr.rel (0) target = $region69
    $region68: #{qnetwork_forward.1} parent=1 // pred_region
      %141 = dma.done [#allocation15], 2048
    $region69: #{qnetwork_forward.1} parent=1 // pred_fallthru
      _
    // Predicated region
    $region70: #{qnetwork_forward.1} parent=1 // pred_check
      _
    $region71: #{qnetwork_forward.1} parent=1 // pred_check_branch
      %143 = sbr.rel (0) target = $region73
    $region72: #{qnetwork_forward.1} parent=1 // pred_region
      %144 = dma.done [#allocation15], 16
    $region73: #{qnetwork_forward.1} parent=1 // pred_fallthru
      _
    %v145 = vld [vmem:[#allocation2] sm:$0xff]
    %v146 = vld [vmem:[#allocation5] sm:$0xff]
    %v147 = vld [vmem:[#allocation5 + $0x8] sm:$0xff]
    %v148 = vld [vmem:[#allocation7] sm:$0x1]
    %v150 = vlaneseq
    %v151 = vshrl.u32 %v150, 7
    %v152 = vsub.s32 0, %v151
    %v153 = vrot.slane %v148, %v152
    %vm155 = vcmask 130048
    %v157 = vsel %vm155, %v145, 0
    %159 = vmatprep.subr.mxu0 0.0
    %160 = vmatpush1.msra.mxu0 %v146
    %161 = vmatprep.subr.mxu0 0.0
    %162 = vmatpush1.msra.mxu0 %v147
    %163 = vmatprep.subr.mxu0 0.0
    %164 = vmatpush1.msra.mxu0 0.0
    %165 = vmatprep.subr.mxu0 0.0
    %166 = vmatpush1.msra.mxu0 0.0
    %167 = vmatprep.subr.mxu0 0.0
    %168 = vmatpush1.msra.mxu0 0.0
    %169 = vmatprep.subr.mxu0 0.0
    %170 = vmatpush1.msra.mxu0 0.0
    %171 = vmatprep.subr.mxu0 0.0
    %172 = vmatpush1.msra.mxu0 0.0
    %173 = vmatprep.subr.mxu0 0.0
    %174 = vmatpush1.msra.mxu0 0.0
    %175 = vmatprep.subr.mxu0 0.0
    %176 = vmatpush1.msra.mxu0 0.0
    %177 = vmatprep.subr.mxu0 0.0
    %178 = vmatpush1.msra.mxu0 0.0
    %179 = vmatprep.subr.mxu0 0.0
    %180 = vmatpush1.msra.mxu0 0.0
    %181 = vmatprep.subr.mxu0 0.0
    %182 = vmatpush1.msra.mxu0 0.0
    %183 = vmatprep.subr.mxu0 0.0
    %184 = vmatpush1.msra.mxu0 0.0
    %185 = vmatprep.subr.mxu0 0.0
    %186 = vmatpush1.msra.mxu0 0.0
    %187 = vmatprep.subr.mxu0 0.0
    %188 = vmatpush1.msra.mxu0 0.0
    %189 = vmatprep.subr.mxu0 0.0
    %190 = vmatpush1.msra.mxu0 0.0
    %191 = vmatprep.subr.mxu0 0.0
    %192 = vmatpush1.msra.mxu0 0.0
    %193 = vmatprep.subr.mxu0 0.0
    %194 = vmatpush1.msra.mxu0 0.0
    %195 = vmatprep.subr.mxu0 0.0
    %196 = vmatpush1.msra.mxu0 0.0
    %197 = vmatprep.subr.mxu0 0.0
    %198 = vmatpush1.msra.mxu0 0.0
    %199 = vmatprep.subr.mxu0 0.0
    %200 = vmatpush1.msra.mxu0 0.0
    %201 = vmatprep.subr.mxu0 0.0
    %202 = vmatpush1.msra.mxu0 0.0
    %203 = vmatprep.subr.mxu0 0.0
    %204 = vmatpush1.msra.mxu0 0.0
    %205 = vmatprep.subr.mxu0 0.0
    %206 = vmatpush1.msra.mxu0 0.0
    %207 = vmatprep.subr.mxu0 0.0
    %208 = vmatpush1.msra.mxu0 0.0
    %209 = vmatprep.subr.mxu0 0.0
    %210 = vmatpush1.msra.mxu0 0.0
    %211 = vmatprep.subr.mxu0 0.0
    %212 = vmatpush1.msra.mxu0 0.0
    %213 = vmatprep.subr.mxu0 0.0
    %214 = vmatpush1.msra.mxu0 0.0
    %215 = vmatprep.subr.mxu0 0.0
    %216 = vmatpush1.msra.mxu0 0.0
    %217 = vmatprep.subr.mxu0 0.0
    %218 = vmatpush1.msra.mxu0 0.0
    %219 = vmatprep.subr.mxu0 0.0
    %220 = vmatpush1.msra.mxu0 0.0
    %221 = vmatprep.subr.mxu0 0.0
    %222 = vmatpush1.msra.mxu0 0.0
    %223 = vmatprep.mubr.f32.mxu0 0.0
    %224 = vmatmul.mubr.f32.gmra.mrb[0].mxu0 %v157
    %v225 = vpop.f32.mrb[0].mxu0
    %v226 = vadd.f32 %v153, %v225
    %v227 = vpop.f32.mrb[0].mxu0
    %228 = vdwg.mxu0
    %v229 = vmax.f32 %v226, 0.0
    %v230 = vld [vmem:[#allocation8] sm:$0xff]
    %v231 = vld [vmem:[#allocation8 + $0x8] sm:$0xff]
    %v232 = vld [vmem:[#allocation8 + $0x10] sm:$0xff]
    %v233 = vld [vmem:[#allocation8 + $0x18] sm:$0xff]
    %v234 = vld [vmem:[#allocation8 + $0x20] sm:$0xff]
    %v235 = vld [vmem:[#allocation8 + $0x28] sm:$0xff]
    %v236 = vld [vmem:[#allocation8 + $0x30] sm:$0xff]
    %v237 = vld [vmem:[#allocation8 + $0x38] sm:$0xff]
    %v238 = vld [vmem:[#allocation8 + $0x40] sm:$0xff]
    %v239 = vld [vmem:[#allocation8 + $0x48] sm:$0xff]
    %v240 = vld [vmem:[#allocation8 + $0x50] sm:$0xff]
    %v241 = vld [vmem:[#allocation8 + $0x58] sm:$0xff]
    %v242 = vld [vmem:[#allocation8 + $0x60] sm:$0xff]
    %v243 = vld [vmem:[#allocation8 + $0x68] sm:$0xff]
    %v244 = vld [vmem:[#allocation8 + $0x70] sm:$0xff]
    %v245 = vld [vmem:[#allocation8 + $0x78] sm:$0xff]
    %v246 = vld [vmem:[#allocation8 + $0x80] sm:$0xff]
    %v247 = vld [vmem:[#allocation8 + $0x88] sm:$0xff]
    %v248 = vld [vmem:[#allocation8 + $0x90] sm:$0xff]
    %v249 = vld [vmem:[#allocation8 + $0x98] sm:$0xff]
    %v250 = vld [vmem:[#allocation8 + $0xa0] sm:$0xff]
    %v251 = vld [vmem:[#allocation8 + $0xa8] sm:$0xff]
    %v252 = vld [vmem:[#allocation8 + $0xb0] sm:$0xff]
    %v253 = vld [vmem:[#allocation8 + $0xb8] sm:$0xff]
    %v254 = vld [vmem:[#allocation8 + $0xc0] sm:$0xff]
    %v255 = vld [vmem:[#allocation8 + $0xc8] sm:$0xff]
    %v256 = vld [vmem:[#allocation8 + $0xd0] sm:$0xff]
    %v257 = vld [vmem:[#allocation8 + $0xd8] sm:$0xff]
    %v258 = vld [vmem:[#allocation8 + $0xe0] sm:$0xff]
    %v259 = vld [vmem:[#allocation8 + $0xe8] sm:$0xff]
    %v260 = vld [vmem:[#allocation8 + $0xf0] sm:$0xff]
    %v261 = vld [vmem:[#allocation8 + $0xf8] sm:$0xff]
    %v262 = vld [vmem:[#allocation10] sm:$0x3]
    %v264 = vlaneseq
    %v265 = vshrl.u32 %v264, 7
    %v266 = vsub.s32 0, %v265
    %v267 = vrot.slane %v262, %v266
    %v268 = vlaneseq
    %v269 = vshrl.u32 %v268, 7
    %v270 = vsub.s32 1, %v269
    %v271 = vrot.slane %v262, %v270
    %274 = vmatprep.subr.mxu0 %v231
    %275 = vmatpush1.msra.mxu0 %v230
    %276 = vmatprep.subr.mxu0 %v233
    %277 = vmatpush1.msra.mxu0 %v232
    %278 = vmatprep.subr.mxu0 %v235
    %279 = vmatpush1.msra.mxu0 %v234
    %280 = vmatprep.subr.mxu0 %v237
    %281 = vmatpush1.msra.mxu0 %v236
    %282 = vmatprep.subr.mxu0 %v239
    %283 = vmatpush1.msra.mxu0 %v238
    %284 = vmatprep.subr.mxu0 %v241
    %285 = vmatpush1.msra.mxu0 %v240
    %286 = vmatprep.subr.mxu0 %v243
    %287 = vmatpush1.msra.mxu0 %v242
    %288 = vmatprep.subr.mxu0 %v245
    %289 = vmatpush1.msra.mxu0 %v244
    %290 = vmatprep.subr.mxu0 %v247
    %291 = vmatpush1.msra.mxu0 %v246
    %292 = vmatprep.subr.mxu0 %v249
    %293 = vmatpush1.msra.mxu0 %v248
    %294 = vmatprep.subr.mxu0 %v251
    %295 = vmatpush1.msra.mxu0 %v250
    %296 = vmatprep.subr.mxu0 %v253
    %297 = vmatpush1.msra.mxu0 %v252
    %298 = vmatprep.subr.mxu0 %v255
    %299 = vmatpush1.msra.mxu0 %v254
    %300 = vmatprep.subr.mxu0 %v257
    %301 = vmatpush1.msra.mxu0 %v256
    %302 = vmatprep.subr.mxu0 %v259
    %303 = vmatpush1.msra.mxu0 %v258
    %304 = vmatprep.subr.mxu0 %v261
    %305 = vmatpush1.msra.mxu0 %v260
    %306 = vmatprep.subr.mxu0 0.0
    %307 = vmatpush1.msra.mxu0 0.0
    %308 = vmatprep.subr.mxu0 0.0
    %309 = vmatpush1.msra.mxu0 0.0
    %310 = vmatprep.subr.mxu0 0.0
    %311 = vmatpush1.msra.mxu0 0.0
    %312 = vmatprep.subr.mxu0 0.0
    %313 = vmatpush1.msra.mxu0 0.0
    %314 = vmatprep.subr.mxu0 0.0
    %315 = vmatpush1.msra.mxu0 0.0
    %316 = vmatprep.subr.mxu0 0.0
    %317 = vmatpush1.msra.mxu0 0.0
    %318 = vmatprep.subr.mxu0 0.0
    %319 = vmatpush1.msra.mxu0 0.0
    %320 = vmatprep.subr.mxu0 0.0
    %321 = vmatpush1.msra.mxu0 0.0
    %322 = vmatprep.subr.mxu0 0.0
    %323 = vmatpush1.msra.mxu0 0.0
    %324 = vmatprep.subr.mxu0 0.0
    %325 = vmatpush1.msra.mxu0 0.0
    %326 = vmatprep.subr.mxu0 0.0
    %327 = vmatpush1.msra.mxu0 0.0
    %328 = vmatprep.subr.mxu0 0.0
    %329 = vmatpush1.msra.mxu0 0.0
    %330 = vmatprep.subr.mxu0 0.0
    %331 = vmatpush1.msra.mxu0 0.0
    %332 = vmatprep.subr.mxu0 0.0
    %333 = vmatpush1.msra.mxu0 0.0
    %334 = vmatprep.subr.mxu0 0.0
    %335 = vmatpush1.msra.mxu0 0.0
    %336 = vmatprep.subr.mxu0 0.0
    %337 = vmatpush1.msra.mxu0 0.0
    %338 = vmatprep.mubr.f32.mxu0 0.0
    %339 = vmatmul.mubr.f32.gmra.mrb[0].mxu0 %v229
    %v340 = vpop.f32.mrb[0].mxu0
    %v341 = vadd.f32 %v267, %v340
    %v342 = vpop.f32.mrb[0].mxu0
    %v343 = vadd.f32 %v271, %v342
    %344 = vdwg.mxu0
    %v345 = vmax.f32 %v341, 0.0
    %v346 = vmax.f32 %v343, 0.0
    %v347 = vld [vmem:[#allocation11] sm:$0xff]
    %v348 = vld [vmem:[#allocation11 + $0x8] sm:$0xff]
    %v349 = vld [vmem:[#allocation11 + $0x10] sm:$0xff]
    %v350 = vld [vmem:[#allocation11 + $0x18] sm:$0xff]
    %v351 = vld [vmem:[#allocation11 + $0x20] sm:$0xff]
    %v352 = vld [vmem:[#allocation11 + $0x28] sm:$0xff]
    %v353 = vld [vmem:[#allocation11 + $0x30] sm:$0xff]
    %v354 = vld [vmem:[#allocation11 + $0x38] sm:$0xff]
    %v355 = vld [vmem:[#allocation11 + $0x40] sm:$0xff]
    %v356 = vld [vmem:[#allocation11 + $0x48] sm:$0xff]
    %v357 = vld [vmem:[#allocation11 + $0x50] sm:$0xff]
    %v358 = vld [vmem:[#allocation11 + $0x58] sm:$0xff]
    %v359 = vld [vmem:[#allocation11 + $0x60] sm:$0xff]
    %v360 = vld [vmem:[#allocation11 + $0x68] sm:$0xff]
    %v361 = vld [vmem:[#allocation11 + $0x70] sm:$0xff]
    %v362 = vld [vmem:[#allocation11 + $0x78] sm:$0xff]
    %v363 = vld [vmem:[#allocation11 + $0x80] sm:$0xff]
    %v364 = vld [vmem:[#allocation11 + $0x88] sm:$0xff]
    %v365 = vld [vmem:[#allocation11 + $0x90] sm:$0xff]
    %v366 = vld [vmem:[#allocation11 + $0x98] sm:$0xff]
    %v367 = vld [vmem:[#allocation11 + $0xa0] sm:$0xff]
    %v368 = vld [vmem:[#allocation11 + $0xa8] sm:$0xff]
    %v369 = vld [vmem:[#allocation11 + $0xb0] sm:$0xff]
    %v370 = vld [vmem:[#allocation11 + $0xb8] sm:$0xff]
    %v371 = vld [vmem:[#allocation11 + $0xc0] sm:$0xff]
    %v372 = vld [vmem:[#allocation11 + $0xc8] sm:$0xff]
    %v373 = vld [vmem:[#allocation11 + $0xd0] sm:$0xff]
    %v374 = vld [vmem:[#allocation11 + $0xd8] sm:$0xff]
    %v375 = vld [vmem:[#allocation11 + $0xe0] sm:$0xff]
    %v376 = vld [vmem:[#allocation11 + $0xe8] sm:$0xff]
    %v377 = vld [vmem:[#allocation11 + $0xf0] sm:$0xff]
    %v378 = vld [vmem:[#allocation11 + $0xf8] sm:$0xff]
    %v379 = vld [vmem:[#allocation13] sm:$0x1]
    %v381 = vlaneseq
    %v382 = vshrl.u32 %v381, 7
    %v383 = vsub.s32 0, %v382
    %v384 = vrot.slane %v379, %v383
    %386 = vmatprep.subr.mxu0 0.0
    %387 = vmatpush1.msra.mxu0 %v347
    %388 = vmatprep.subr.mxu0 0.0
    %389 = vmatpush1.msra.mxu0 %v348
    %390 = vmatprep.subr.mxu0 0.0
    %391 = vmatpush1.msra.mxu0 %v349
    %392 = vmatprep.subr.mxu0 0.0
    %393 = vmatpush1.msra.mxu0 %v350
    %394 = vmatprep.subr.mxu0 0.0
    %395 = vmatpush1.msra.mxu0 %v351
    %396 = vmatprep.subr.mxu0 0.0
    %397 = vmatpush1.msra.mxu0 %v352
    %398 = vmatprep.subr.mxu0 0.0
    %399 = vmatpush1.msra.mxu0 %v353
    %400 = vmatprep.subr.mxu0 0.0
    %401 = vmatpush1.msra.mxu0 %v354
    %402 = vmatprep.subr.mxu0 0.0
    %403 = vmatpush1.msra.mxu0 %v355
    %404 = vmatprep.subr.mxu0 0.0
    %405 = vmatpush1.msra.mxu0 %v356
    %406 = vmatprep.subr.mxu0 0.0
    %407 = vmatpush1.msra.mxu0 %v357
    %408 = vmatprep.subr.mxu0 0.0
    %409 = vmatpush1.msra.mxu0 %v358
    %410 = vmatprep.subr.mxu0 0.0
    %411 = vmatpush1.msra.mxu0 %v359
    %412 = vmatprep.subr.mxu0 0.0
    %413 = vmatpush1.msra.mxu0 %v360
    %414 = vmatprep.subr.mxu0 0.0
    %415 = vmatpush1.msra.mxu0 %v361
    %416 = vmatprep.subr.mxu0 0.0
    %417 = vmatpush1.msra.mxu0 %v362
    %418 = vmatprep.subr.mxu0 0.0
    %419 = vmatpush1.msra.mxu0 %v363
    %420 = vmatprep.subr.mxu0 0.0
    %421 = vmatpush1.msra.mxu0 %v364
    %422 = vmatprep.subr.mxu0 0.0
    %423 = vmatpush1.msra.mxu0 %v365
    %424 = vmatprep.subr.mxu0 0.0
    %425 = vmatpush1.msra.mxu0 %v366
    %426 = vmatprep.subr.mxu0 0.0
    %427 = vmatpush1.msra.mxu0 %v367
    %428 = vmatprep.subr.mxu0 0.0
    %429 = vmatpush1.msra.mxu0 %v368
    %430 = vmatprep.subr.mxu0 0.0
    %431 = vmatpush1.msra.mxu0 %v369
    %432 = vmatprep.subr.mxu0 0.0
    %433 = vmatpush1.msra.mxu0 %v370
    %434 = vmatprep.subr.mxu0 0.0
    %435 = vmatpush1.msra.mxu0 %v371
    %436 = vmatprep.subr.mxu0 0.0
    %437 = vmatpush1.msra.mxu0 %v372
    %438 = vmatprep.subr.mxu0 0.0
    %439 = vmatpush1.msra.mxu0 %v373
    %440 = vmatprep.subr.mxu0 0.0
    %441 = vmatpush1.msra.mxu0 %v374
    %442 = vmatprep.subr.mxu0 0.0
    %443 = vmatpush1.msra.mxu0 %v375
    %444 = vmatprep.subr.mxu0 0.0
    %445 = vmatpush1.msra.mxu0 %v376
    %446 = vmatprep.subr.mxu0 0.0
    %447 = vmatpush1.msra.mxu0 %v377
    %448 = vmatprep.subr.mxu0 0.0
    %449 = vmatpush1.msra.mxu0 %v378
    %450 = vmatprep.mubr.f32.mxu0 %v346
    %451 = vmatmul.mubr.f32.gmra.mrb[0].mxu0 %v345
    %v452 = vpop.f32.mrb[0].mxu0
    %v453 = vadd.f32 %v384, %v452
    %v454 = vpop.f32.mrb[0].mxu0
    %455 = vdwg.mxu0
    %v456 = vmax.f32 %v453, 0.0
    %v457 = vld [vmem:[#allocation14] sm:$0xff]
    %v458 = vld [vmem:[#allocation14 + $0x8] sm:$0xff]
    %v459 = vld [vmem:[#allocation14 + $0x10] sm:$0xff]
    %v460 = vld [vmem:[#allocation14 + $0x18] sm:$0xff]
    %v461 = vld [vmem:[#allocation14 + $0x20] sm:$0xff]
    %v462 = vld [vmem:[#allocation14 + $0x28] sm:$0xff]
    %v463 = vld [vmem:[#allocation14 + $0x30] sm:$0xff]
    %v464 = vld [vmem:[#allocation14 + $0x38] sm:$0xff]
    %v465 = vld [vmem:[#allocation14 + $0x40] sm:$0xff]
    %v466 = vld [vmem:[#allocation14 + $0x48] sm:$0xff]
    %v467 = vld [vmem:[#allocation14 + $0x50] sm:$0xff]
    %v468 = vld [vmem:[#allocation14 + $0x58] sm:$0xff]
    %v469 = vld [vmem:[#allocation14 + $0x60] sm:$0xff]
    %v470 = vld [vmem:[#allocation14 + $0x68] sm:$0xff]
    %v471 = vld [vmem:[#allocation14 + $0x70] sm:$0xff]
    %v472 = vld [vmem:[#allocation14 + $0x78] sm:$0xff]
    %v473 = vld [vmem:[#allocation16] sm:$0x1]
    %v475 = vlaneseq
    %v476 = vshrl.u32 %v475, 7
    %v477 = vsub.s32 0, %v476
    %v478 = vrot.slane %v473, %v477
    %480 = vmatprep.subr.mxu0 0.0
    %481 = vmatpush1.msra.mxu0 %v457
    %482 = vmatprep.subr.mxu0 0.0
    %483 = vmatpush1.msra.mxu0 %v458
    %484 = vmatprep.subr.mxu0 0.0
    %485 = vmatpush1.msra.mxu0 %v459
    %486 = vmatprep.subr.mxu0 0.0
    %487 = vmatpush1.msra.mxu0 %v460
    %488 = vmatprep.subr.mxu0 0.0
    %489 = vmatpush1.msra.mxu0 %v461
    %490 = vmatprep.subr.mxu0 0.0
    %491 = vmatpush1.msra.mxu0 %v462
    %492 = vmatprep.subr.mxu0 0.0
    %493 = vmatpush1.msra.mxu0 %v463
    %494 = vmatprep.subr.mxu0 0.0
    %495 = vmatpush1.msra.mxu0 %v464
    %496 = vmatprep.subr.mxu0 0.0
    %497 = vmatpush1.msra.mxu0 %v465
    %498 = vmatprep.subr.mxu0 0.0
    %499 = vmatpush1.msra.mxu0 %v466
    %500 = vmatprep.subr.mxu0 0.0
    %501 = vmatpush1.msra.mxu0 %v467
    %502 = vmatprep.subr.mxu0 0.0
    %503 = vmatpush1.msra.mxu0 %v468
    %504 = vmatprep.subr.mxu0 0.0
    %505 = vmatpush1.msra.mxu0 %v469
    %506 = vmatprep.subr.mxu0 0.0
    %507 = vmatpush1.msra.mxu0 %v470
    %508 = vmatprep.subr.mxu0 0.0
    %509 = vmatpush1.msra.mxu0 %v471
    %510 = vmatprep.subr.mxu0 0.0
    %511 = vmatpush1.msra.mxu0 %v472
    %512 = vmatprep.subr.mxu0 0.0
    %513 = vmatpush1.msra.mxu0 0.0
    %514 = vmatprep.subr.mxu0 0.0
    %515 = vmatpush1.msra.mxu0 0.0
    %516 = vmatprep.subr.mxu0 0.0
    %517 = vmatpush1.msra.mxu0 0.0
    %518 = vmatprep.subr.mxu0 0.0
    %519 = vmatpush1.msra.mxu0 0.0
    %520 = vmatprep.subr.mxu0 0.0
    %521 = vmatpush1.msra.mxu0 0.0
    %522 = vmatprep.subr.mxu0 0.0
    %523 = vmatpush1.msra.mxu0 0.0
    %524 = vmatprep.subr.mxu0 0.0
    %525 = vmatpush1.msra.mxu0 0.0
    %526 = vmatprep.subr.mxu0 0.0
    %527 = vmatpush1.msra.mxu0 0.0
    %528 = vmatprep.subr.mxu0 0.0
    %529 = vmatpush1.msra.mxu0 0.0
    %530 = vmatprep.subr.mxu0 0.0
    %531 = vmatpush1.msra.mxu0 0.0
    %532 = vmatprep.subr.mxu0 0.0
    %533 = vmatpush1.msra.mxu0 0.0
    %534 = vmatprep.subr.mxu0 0.0
    %535 = vmatpush1.msra.mxu0 0.0
    %536 = vmatprep.subr.mxu0 0.0
    %537 = vmatpush1.msra.mxu0 0.0
    %538 = vmatprep.subr.mxu0 0.0
    %539 = vmatpush1.msra.mxu0 0.0
    %540 = vmatprep.subr.mxu0 0.0
    %541 = vmatpush1.msra.mxu0 0.0
    %542 = vmatprep.subr.mxu0 0.0
    %543 = vmatpush1.msra.mxu0 0.0
    %544 = vmatprep.mubr.f32.mxu0 0.0
    %545 = vmatmul.mubr.f32.gmra.mrb[0].mxu0 %v456
    %v546 = vpop.f32.mrb[0].mxu0
    %v547 = vadd.f32 %v478, %v546
    %v548 = vpop.f32.mrb[0].mxu0
    %549 = vdwg.mxu0
    %550 = vst [vmem:[#allocation17] sm:$0xff] %v547
    // Predicated region
    $region74: #{qnetwork_forward.1} parent=1 // pred_check
      _
    $region75: #{qnetwork_forward.1} parent=1 // pred_check_branch
      %552 = sbr.rel (0) target = $region77
    $region76: #{qnetwork_forward.1} parent=1 // pred_region
      %s554 = ssub.s32 128, 128
      %555 = vsyncadd [#allocation4], %s554
      %s557 = sshll.u32 [#allocation17], 4
      %s558 = int_to_ptr.vmem [resolvable:$true] %s557
      %560 = dma.vmem_to_hbm [thread:$0]  %s558, 128, %s9, [#allocation4]
    $region77: #{qnetwork_forward.1} parent=1 // pred_fallthru
      _
    // Predicated region
    $region78: #{qnetwork_forward.1} parent=1 // pred_check
      _
    $region79: #{qnetwork_forward.1} parent=1 // pred_check_branch
      %562 = sbr.rel (0) target = $region81
    $region80: #{qnetwork_forward.1} parent=1 // pred_region
      %563 = dma.done [#allocation4], 128
    $region81: #{qnetwork_forward.1} parent=1 // pred_fallthru
      _
    %564 = vsyncpa [#allocation3], 1
    %565 = vsyncpa [#allocation6], 1
    %566 = vsyncpa [#allocation9], 1
    %567 = vsyncpa [#allocation12], 1
    %568 = vsyncpa [#allocation15], 1
    %569 = vsyncpa [#allocation4], 1

</llo_original>
